<compile_context>
chip_gen: v6e
topology: v6e:2x2x1
jax: 0.10.0
libtpu: 0.0.40
codegen_flags: <defaults>
</compile_context>

<pallas_src>
import functools
import math

import jax
import jax.numpy as jnp
from jax.experimental import pallas as pl
from jax.experimental.pallas import tpu as pltpu

LN_EPS = 1e-12  # BertLayerNorm default eps


def _gelu(x, exact=False):
    if exact:
        # BERT's original erf-based gelu (bit-faithful to torch in f32).
        return 0.5 * x * (1.0 + jax.lax.erf(x * (1.0 / math.sqrt(2.0))))
    # TODO(synk): default is the tanh approximation (EUP-friendly); it drifts
    # ~1e-3 from torch's erf gelu -- pass exact_gelu=True for the erf form.
    c = math.sqrt(2.0 / math.pi)
    return 0.5 * x * (1.0 + jnp.tanh(c * (x + 0.044715 * x * x * x)))


def _round_up(x, m):
    return ((x + m - 1) // m) * m


def _sublane_quantum(dtype):
    # Packed-sublane row quantum: 8 for 32-bit, 16 for bf16, 32 for int8/fp8.
    return {4: 8, 2: 16, 1: 32}[jnp.dtype(dtype).itemsize]


def _heads_kernel(h_ref, wdT_ref, bd_ref, gamma_ref, beta_ref,
                  embT_ref, dbias_ref, o_ref, t_ref, *, exact_gelu):
    # ---- BertPredictionHeadTransform: run once per row tile, cache in VMEM ----
    # (t_ref holds the post-LayerNorm activations in the compute dtype; use a
    #  float32 compute_dtype if full logit fidelity is required.)
    @pl.when(pl.program_id(1) == 0)
    def _():
        x = h_ref[...]                                       # (tm, H)
        t = jnp.dot(x, wdT_ref[...],                         # (H, H) K-major
                    preferred_element_type=jnp.float32)
        t = t + bd_ref[...]                                  # (1, H) f32 broadcast
        t = _gelu(t, exact=exact_gelu)
        mean = jnp.mean(t, axis=-1, keepdims=True)
        var = jnp.mean(jnp.square(t - mean), axis=-1, keepdims=True)
        t = (t - mean) * jax.lax.rsqrt(var + LN_EPS)
        t = t * gamma_ref[...] + beta_ref[...]
        t_ref[...] = t.astype(t_ref.dtype)

    # ---- decoder: plain (tm,H) x (H,tn) MXU matmul + f32 bias, then downcast ----
    logits = jnp.dot(t_ref[...], embT_ref[...],
                     preferred_element_type=jnp.float32)
    o_ref[...] = (logits + dbias_ref[...]).astype(o_ref.dtype)


def prepare_heads_params(dense_w, dense_b, ln_gamma, ln_beta,
                         embedding_weights, decoder_bias, *,
                         tn=1024, compute_dtype=jnp.bfloat16):
    """One-time weight preparation: cast, K-major transpose, vocab padding.

    Call this ONCE and reuse the result across forward calls -- re-doing the
    O(V*H) cast/pad/transpose per call would add an HBM read+write rivaling
    the kernel's own traffic.  Returns (params, V, tn_eff); V / tn_eff are
    static Python ints.
    """
    H = dense_w.shape[0]
    V = embedding_weights.shape[0]
    tn_eff = min(tn, _round_up(V, 128))        # lane-dense vocab tile
    v_pad = _round_up(V, tn_eff)

    wd_t = jnp.asarray(dense_w).T.astype(compute_dtype)             # (H_in, H_out)
    emb_t = jnp.asarray(embedding_weights).T.astype(compute_dtype)  # (H, V) K-major
    dbias = jnp.asarray(decoder_bias).astype(jnp.float32)
    if v_pad != V:
        emb_t = jnp.pad(emb_t, ((0, 0), (0, v_pad - V)))
        dbias = jnp.pad(dbias, (0, v_pad - V))

    params = dict(
        wd_t=wd_t,
        bd=jnp.asarray(dense_b).astype(jnp.float32).reshape(1, H),
        gamma=jnp.asarray(ln_gamma).astype(jnp.float32).reshape(1, H),
        beta=jnp.asarray(ln_beta).astype(jnp.float32).reshape(1, H),
        emb_t=emb_t,
        dbias=dbias.reshape(1, v_pad),
    )
    return params, V, tn_eff


@functools.partial(jax.jit,
                   static_argnames=("V", "tn", "tm", "out_dtype", "exact_gelu"))
def _heads_call(hidden_states, wd_t, bd, gamma, beta, emb_t, dbias, *,
                V, tn, tm, out_dtype, exact_gelu):
    B, S, H = hidden_states.shape
    M = B * S
    compute_dtype = wd_t.dtype
    v_pad = emb_t.shape[1]
    assert v_pad % tn == 0, "prepared vocab padding must be a multiple of tn"

    # Row tile: multiple of the packed-sublane quantum (16 for bf16), and keep
    # >= 2 row tiles when M allows so the "parallel" axis actually shards over
    # the two v7x TensorCores instead of serializing onto one.
    sub = _sublane_quantum(compute_dtype)
    tm_eff = _round_up(min(tm, M), sub)
    if _round_up(M, tm_eff) // tm_eff < 2 and M > sub:
        tm_eff = max(sub, _round_up((M + 1) // 2, sub))
    m_pad = _round_up(M, tm_eff)

    x2d = hidden_states.reshape(M, H).astype(compute_dtype)
    if m_pad != M:
        # Padded rows see var == 0 in the LayerNorm -> rsqrt(eps) * 0 -> beta:
        # finite (no NaN risk) and sliced off below.  Keep it that way.
        x2d = jnp.pad(x2d, ((0, m_pad - M), (0, 0)))

    grid = (m_pad // tm_eff, v_pad // tn)

    # VMEM working set: double-buffered streams + single-buffered constants +
    # cached-transform scratch + in-kernel f32 temporaries, with ~30% slack.
    cd_b = jnp.dtype(compute_dtype).itemsize
    out_b = jnp.dtype(out_dtype).itemsize
    need = (2 * tm_eff * H * cd_b              # hidden rows (2 buffers)
            + H * H * cd_b                      # dense W^T (single buffer)
            + 3 * H * 4 + 2 * tn * 4            # LN/bias params + bias tile
            + 2 * H * tn * cd_b                 # embedding tile (2 buffers)
            + 2 * tm_eff * tn * out_b           # output tile (2 buffers)
            + tm_eff * H * cd_b                 # cached transform scratch
            + tm_eff * tn * 4 + tm_eff * H * 4)  # f32 logits / transform temps
    # Floor at the 32 MiB scoped default; cap at 64 MiB for the v7x generation.
    vmem_limit = int(min(max(need * 13 // 10, 32 * 1024 * 1024),
                         64 * 1024 * 1024))

    const = pl.Buffered(1)   # grid-invariant inputs: no double-buffering
    out = pl.pallas_call(
        functools.partial(_heads_kernel, exact_gelu=exact_gelu),
        out_shape=jax.ShapeDtypeStruct((m_pad, v_pad), out_dtype),
        grid_spec=pltpu.PrefetchScalarGridSpec(
            num_scalar_prefetch=0,
            grid=grid,
            in_specs=[
                pl.BlockSpec((tm_eff, H), lambda i, j: (i, 0)),   # hidden rows
                pl.BlockSpec((H, H), lambda i, j: (0, 0),
                             pipeline_mode=const),                # dense W^T
                pl.BlockSpec((1, H), lambda i, j: (0, 0),
                             pipeline_mode=const),                # dense bias
                pl.BlockSpec((1, H), lambda i, j: (0, 0),
                             pipeline_mode=const),                # LN gamma
                pl.BlockSpec((1, H), lambda i, j: (0, 0),
                             pipeline_mode=const),                # LN beta
                pl.BlockSpec((H, tn), lambda i, j: (0, j)),       # E^T vocab tile
                pl.BlockSpec((1, tn), lambda i, j: (0, j)),       # decoder bias tile
            ],
            out_specs=pl.BlockSpec((tm_eff, tn), lambda i, j: (i, j)),
            scratch_shapes=[pltpu.VMEM((tm_eff, H), compute_dtype)],  # cached transform
        ),
        compiler_params=pltpu.CompilerParams(
            dimension_semantics=("parallel", "arbitrary"),
            vmem_limit_bytes=vmem_limit,
        ),
    )(x2d, wd_t, bd, gamma, beta, emb_t, dbias)

    return out[:M, :V].reshape(B, S, V)


def bert_pretraining_heads(hidden_states, params, V, tn, *,
                           tm=512, out_dtype=jnp.bfloat16, exact_gelu=False):
    """hidden_states: (B, S, H); params/V/tn from prepare_heads_params.
    Returns (B, S, V) logits in `out_dtype`."""
    return _heads_call(hidden_states, params["wd_t"], params["bd"],
                       params["gamma"], params["beta"], params["emb_t"],
                       params["dbias"], V=V, tn=tn, tm=tm,
                       out_dtype=out_dtype, exact_gelu=exact_gelu)


def _reference(hidden_states, dense_w, dense_b, ln_gamma, ln_beta,
               embedding_weights, decoder_bias):
    t = jnp.einsum("bsh,oh->bso", hidden_states, dense_w) + dense_b
    t = _gelu(t)
    mean = jnp.mean(t, axis=-1, keepdims=True)
    var = jnp.mean((t - mean) ** 2, axis=-1, keepdims=True)
    t = (t - mean) / jnp.sqrt(var + LN_EPS) * ln_gamma + ln_beta
    return jnp.einsum("bsh,vh->bsv", t, embedding_weights) + decoder_bias


if __name__ == "__main__":
    B, S, H, V = 2, 8, 32, 300   # V not a multiple of 128 -> exercises padding
    key = jax.random.PRNGKey(0)
    k0, k1, k2, k3, k4, k5 = jax.random.split(key, 6)

    hidden_states = jax.random.normal(k0, (B, S, H), dtype=jnp.float32)
    dense_w = 0.1 * jax.random.normal(k1, (H, H), dtype=jnp.float32)   # torch Linear: (out, in)
    dense_b = 0.05 * jax.random.normal(k2, (H,), dtype=jnp.float32)
    ln_gamma = 1.0 + 0.01 * jax.random.normal(k3, (H,), dtype=jnp.float32)
    ln_beta = 0.01 * jax.random.normal(k4, (H,), dtype=jnp.float32)
    embedding_weights = 0.1 * jax.random.normal(k5, (V, H), dtype=jnp.float32)
    decoder_bias = jnp.zeros((V,), dtype=jnp.float32)   # nn.Parameter(torch.zeros(V))

    ref = _reference(hidden_states, dense_w, dense_b, ln_gamma, ln_beta,
                     embedding_weights, decoder_bias)

    # 1) Production defaults: bf16 streams + bf16 logits, tn=1024 (clamped to
    #    the padded vocab), tm=512 (clamped to this demo's 16 rows).
    p_bf16, V_a, tn_a = prepare_heads_params(dense_w, dense_b, ln_gamma, ln_beta,
                                             embedding_weights, decoder_bias)
    out_a = bert_pretraining_heads(hidden_states, p_bf16, V_a, tn_a)
    out_a = jax.block_until_ready(out_a)
    assert out_a.shape == (B, S, V)
    assert jnp.allclose(out_a.astype(jnp.float32), ref, atol=5e-2, rtol=5e-2), \
        "bf16 default-tile mismatch vs reference"

    # 2) Small vocab tiles (tn=128): multi-tile vocab sweep exercising the
    #    cached-transform reuse across vocab tiles plus the V-padding path.
    p_b, V_b, tn_b = prepare_heads_params(dense_w, dense_b, ln_gamma, ln_beta,
                                          embedding_weights, decoder_bias,
                                          tn=128)
    out_b = bert_pretraining_heads(hidden_states, p_b, V_b, tn_b, tm=8)
    out_b = jax.block_until_ready(out_b)
    assert jnp.allclose(out_b.astype(jnp.float32), ref, atol=5e-2, rtol=5e-2), \
        "bf16 small-tile mismatch vs reference"

    # 3) Full f32 path as an exact-semantics anchor (multi-tile rows AND vocab).
    p_c, V_c, tn_c = prepare_heads_params(dense_w, dense_b, ln_gamma, ln_beta,
                                          embedding_weights, decoder_bias,
                                          tn=128, compute_dtype=jnp.float32)
    out_c = bert_pretraining_heads(hidden_states, p_c, V_c, tn_c, tm=8,
                                   out_dtype=jnp.float32)
    out_c = jax.block_until_ready(out_c)
    assert jnp.allclose(out_c, ref, atol=1e-4, rtol=1e-4), \
        "f32 mismatch vs reference"

    print("KERNEL_OK")
</pallas_src>

<mosaic_0001>
module attributes {stable_mosaic.version = 11 : i64} {
  func.func @_heads_kernel(%arg0: i32, %arg1: i32, %arg2: memref<16x32xbf16, #tpu.memory_space<vmem>>, %arg3: memref<32x32xbf16, #tpu.memory_space<vmem>>, %arg4: memref<1x32xf32, #tpu.memory_space<vmem>>, %arg5: memref<1x32xf32, #tpu.memory_space<vmem>>, %arg6: memref<1x32xf32, #tpu.memory_space<vmem>>, %arg7: memref<32x384xbf16, #tpu.memory_space<vmem>>, %arg8: memref<1x384xf32, #tpu.memory_space<vmem>>, %arg9: memref<16x384xbf16, #tpu.memory_space<vmem>>, %arg10: memref<16x32xbf16, #tpu.memory_space<vmem>>) attributes {dimension_semantics = [#tpu.dimension_semantics<parallel>, #tpu.dimension_semantics<arbitrary>], iteration_bounds = array<i64: 1, 1>, scalar_prefetch = 0 : i64, scratch_operands = 1 : i64, tpu.core_type = #tpu.core_type<tc>, window_params = [{transform_indices = @transform_0, window_bounds = array<i64: 16, 32>}, {pipeline_mode = #tpu.pipeline_mode<synchronous>, transform_indices = @transform_1, window_bounds = array<i64: 32, 32>}, {pipeline_mode = #tpu.pipeline_mode<synchronous>, transform_indices = @transform_2, window_bounds = array<i64: 1, 32>}, {pipeline_mode = #tpu.pipeline_mode<synchronous>, transform_indices = @transform_3, window_bounds = array<i64: 1, 32>}, {pipeline_mode = #tpu.pipeline_mode<synchronous>, transform_indices = @transform_4, window_bounds = array<i64: 1, 32>}, {transform_indices = @transform_5, window_bounds = array<i64: 32, 384>}, {transform_indices = @transform_6, window_bounds = array<i64: 1, 384>}, {transform_indices = @transform_7, window_bounds = array<i64: 16, 384>}]} {
    %c0_i32 = arith.constant 0 : i32
    %0 = arith.cmpi eq, %arg1, %c0_i32 : i32
    %1 = arith.extui %0 : i1 to i32
    %c0_i32_0 = arith.constant 0 : i32
    %2 = arith.cmpi ne, %1, %c0_i32_0 : i32
    scf.if %2 {
      %c0_8 = arith.constant 0 : index
      %c0_9 = arith.constant 0 : index
      %11 = vector.load %arg2[%c0_8, %c0_9] : memref<16x32xbf16, #tpu.memory_space<vmem>>, vector<16x32xbf16>
      %c0_10 = arith.constant 0 : index
      %c0_11 = arith.constant 0 : index
      %12 = vector.load %arg3[%c0_10, %c0_11] : memref<32x32xbf16, #tpu.memory_space<vmem>>, vector<32x32xbf16>
      %cst_12 = arith.constant dense<0.000000e+00> : vector<16x32xf32>
      %13 = tpu.matmul %11, %12, %cst_12 {dimension_numbers = #tpu.dot_dimension_numbers<[1], [0], [0], [1], [0, 0, 1, 1], [], []>} : vector<16x32xbf16>, vector<32x32xbf16>, vector<16x32xf32> -> vector<16x32xf32>
      %c0_13 = arith.constant 0 : index
      %c0_14 = arith.constant 0 : index
      %14 = vector.load %arg4[%c0_13, %c0_14] : memref<1x32xf32, #tpu.memory_space<vmem>>, vector<1x32xf32>
      %15 = vector.broadcast %14 : vector<1x32xf32> to vector<16x32xf32>
      %16 = arith.addf %13, %15 : vector<16x32xf32>
      %cst_15 = arith.constant 5.000000e-01 : f32
      %17 = vector.broadcast %cst_15 : f32 to vector<16x32xf32>
      %18 = arith.mulf %17, %16 : vector<16x32xf32>
      %cst_16 = arith.constant 4.471500e-02 : f32
      %19 = vector.broadcast %cst_16 : f32 to vector<16x32xf32>
      %20 = arith.mulf %19, %16 : vector<16x32xf32>
      %21 = arith.mulf %20, %16 : vector<16x32xf32>
      %22 = arith.mulf %21, %16 : vector<16x32xf32>
      %23 = arith.addf %16, %22 : vector<16x32xf32>
      %cst_17 = arith.constant 0.797884583 : f32
      %24 = vector.broadcast %cst_17 : f32 to vector<16x32xf32>
      %25 = arith.mulf %24, %23 : vector<16x32xf32>
      %26 = math.tanh %25 : vector<16x32xf32>
      %cst_18 = arith.constant 1.000000e+00 : f32
      %27 = vector.broadcast %cst_18 : f32 to vector<16x32xf32>
      %28 = arith.addf %27, %26 : vector<16x32xf32>
      %29 = arith.mulf %18, %28 : vector<16x32xf32>
      %cst_19 = arith.constant dense<0.000000e+00> : vector<16xf32>
      %30 = vector.multi_reduction <add>, %29, %cst_19 [1] : vector<16x32xf32> to vector<16xf32>
      %31 = vector.shape_cast %30 : vector<16xf32> to vector<16x1xf32>
      %cst_20 = arith.constant 3.200000e+01 : f32
      %32 = vector.broadcast %cst_20 : f32 to vector<16x1xf32>
      %33 = arith.divf %31, %32 : vector<16x1xf32>
      %34 = vector.broadcast %33 : vector<16x1xf32> to vector<16x32xf32>
      %35 = arith.subf %29, %34 : vector<16x32xf32>
      %36 = arith.mulf %35, %35 : vector<16x32xf32>
      %cst_21 = arith.constant dense<0.000000e+00> : vector<16xf32>
      %37 = vector.multi_reduction <add>, %36, %cst_21 [1] : vector<16x32xf32> to vector<16xf32>
      %38 = vector.shape_cast %37 : vector<16xf32> to vector<16x1xf32>
      %cst_22 = arith.constant 3.200000e+01 : f32
      %39 = vector.broadcast %cst_22 : f32 to vector<16x1xf32>
      %40 = arith.divf %38, %39 : vector<16x1xf32>
      %41 = vector.broadcast %33 : vector<16x1xf32> to vector<16x32xf32>
      %42 = arith.subf %29, %41 : vector<16x32xf32>
      %cst_23 = arith.constant 9.99999996E-13 : f32
      %43 = vector.broadcast %cst_23 : f32 to vector<16x1xf32>
      %44 = arith.addf %40, %43 : vector<16x1xf32>
      %45 = math.rsqrt %44 : vector<16x1xf32>
      %46 = vector.broadcast %45 : vector<16x1xf32> to vector<16x32xf32>
      %47 = arith.mulf %42, %46 : vector<16x32xf32>
      %c0_24 = arith.constant 0 : index
      %c0_25 = arith.constant 0 : index
      %48 = vector.load %arg5[%c0_24, %c0_25] : memref<1x32xf32, #tpu.memory_space<vmem>>, vector<1x32xf32>
      %49 = vector.broadcast %48 : vector<1x32xf32> to vector<16x32xf32>
      %50 = arith.mulf %47, %49 : vector<16x32xf32>
      %c0_26 = arith.constant 0 : index
      %c0_27 = arith.constant 0 : index
      %51 = vector.load %arg6[%c0_26, %c0_27] : memref<1x32xf32, #tpu.memory_space<vmem>>, vector<1x32xf32>
      %52 = vector.broadcast %51 : vector<1x32xf32> to vector<16x32xf32>
      %53 = arith.addf %50, %52 : vector<16x32xf32>
      %54 = arith.truncf %53 : vector<16x32xf32> to vector<16x32xbf16>
      %c0_28 = arith.constant 0 : index
      %c0_29 = arith.constant 0 : index
      %55 = vector.load %arg10[%c0_28, %c0_29] : memref<16x32xbf16, #tpu.memory_space<vmem>>, vector<16x32xbf16>
      tpu.vector_store %arg10[%c0_28, %c0_29], %54 {strides = array<i32>} : memref<16x32xbf16, #tpu.memory_space<vmem>>, vector<16x32xbf16>,
    } else {
    }
    %c0 = arith.constant 0 : index
    %c0_1 = arith.constant 0 : index
    %3 = vector.load %arg10[%c0, %c0_1] : memref<16x32xbf16, #tpu.memory_space<vmem>>, vector<16x32xbf16>
    %c0_2 = arith.constant 0 : index
    %c0_3 = arith.constant 0 : index
    %4 = vector.load %arg7[%c0_2, %c0_3] : memref<32x384xbf16, #tpu.memory_space<vmem>>, vector<32x384xbf16>
    %cst = arith.constant dense<0.000000e+00> : vector<16x384xf32>
    %5 = tpu.matmul %3, %4, %cst {dimension_numbers = #tpu.dot_dimension_numbers<[1], [0], [0], [1], [0, 0, 1, 1], [], []>} : vector<16x32xbf16>, vector<32x384xbf16>, vector<16x384xf32> -> vector<16x384xf32>
    %c0_4 = arith.constant 0 : index
    %c0_5 = arith.constant 0 : index
    %6 = vector.load %arg8[%c0_4, %c0_5] : memref<1x384xf32, #tpu.memory_space<vmem>>, vector<1x384xf32>
    %7 = vector.broadcast %6 : vector<1x384xf32> to vector<16x384xf32>
    %8 = arith.addf %5, %7 : vector<16x384xf32>
    %9 = arith.truncf %8 : vector<16x384xf32> to vector<16x384xbf16>
    %c0_6 = arith.constant 0 : index
    %c0_7 = arith.constant 0 : index
    %10 = vector.load %arg9[%c0_6, %c0_7] : memref<16x384xbf16, #tpu.memory_space<vmem>>, vector<16x384xbf16>
    tpu.vector_store %arg9[%c0_6, %c0_7], %9 {strides = array<i32>} : memref<16x384xbf16, #tpu.memory_space<vmem>>, vector<16x384xbf16>,
    return
  }
  func.func @transform_0(%arg0: i32, %arg1: i32) -> (i32, i32) {
    %c0_i32 = arith.constant 0 : i32
    %c0_i32_0 = arith.constant 0 : i32
    return %arg0, %c0_i32 : i32, i32
  }
  func.func @transform_1(%arg0: i32, %arg1: i32) -> (i32, i32) {
    %c0_i32 = arith.constant 0 : i32
    %c0_i32_0 = arith.constant 0 : i32
    %c0_i32_1 = arith.constant 0 : i32
    return %c0_i32, %c0_i32_0 : i32, i32
  }
  func.func @transform_2(%arg0: i32, %arg1: i32) -> (i32, i32) {
    %c0_i32 = arith.constant 0 : i32
    %c0_i32_0 = arith.constant 0 : i32
    %c0_i32_1 = arith.constant 0 : i32
    return %c0_i32, %c0_i32_0 : i32, i32
  }
  func.func @transform_3(%arg0: i32, %arg1: i32) -> (i32, i32) {
    %c0_i32 = arith.constant 0 : i32
    %c0_i32_0 = arith.constant 0 : i32
    %c0_i32_1 = arith.constant 0 : i32
    return %c0_i32, %c0_i32_0 : i32, i32
  }
  func.func @transform_4(%arg0: i32, %arg1: i32) -> (i32, i32) {
    %c0_i32 = arith.constant 0 : i32
    %c0_i32_0 = arith.constant 0 : i32
    %c0_i32_1 = arith.constant 0 : i32
    return %c0_i32, %c0_i32_0 : i32, i32
  }
  func.func @transform_5(%arg0: i32, %arg1: i32) -> (i32, i32) {
    %c0_i32 = arith.constant 0 : i32
    %c0_i32_0 = arith.constant 0 : i32
    return %c0_i32, %arg1 : i32, i32
  }
  func.func @transform_6(%arg0: i32, %arg1: i32) -> (i32, i32) {
    %c0_i32 = arith.constant 0 : i32
    %c0_i32_0 = arith.constant 0 : i32
    return %c0_i32, %arg1 : i32, i32
  }
  func.func @transform_7(%arg0: i32, %arg1: i32) -> (i32, i32) {
    %c0_i32 = arith.constant 0 : i32
    return %arg0, %arg1 : i32, i32
  }
}

</mosaic_0001>

<llo_original>
// kernel: _heads_call.1
$region0: #{_heads_call.1}
  #allocation0 [shape = 'u32[]', space=smem, size = 0x4, offset = 0x4, fixed_abs, tag = 'smem constant byte address 0x4 - core index']
  #allocation1 [shape = 'u32[144,128]{1,0:T(1,128)}', space=vmem, size = 0x12000, scoped, tag = 'internal scratch']
  #allocation2 [shape = 'bf16[16,32]{1,0:T(8,128)(2,1)}', space=vmem, size = 0x1000, scoped, tag = 'scratch operand']
  %s0 = inlined_call_operand.vmem [shape: bf16[16,32], index: 0, kind: input, shape index: {}]
  %s1 = inlined_call_operand.vmem [shape: bf16[32,32], index: 1, kind: input, shape index: {}]
  %s2 = inlined_call_operand.vmem [shape: f32[1,32], index: 2, kind: input, shape index: {}]
  %s3 = inlined_call_operand.vmem [shape: f32[1,32], index: 3, kind: input, shape index: {}]
  %s4 = inlined_call_operand.vmem [shape: f32[1,32], index: 4, kind: input, shape index: {}]
  %s5 = inlined_call_operand.hbm [shape: bf16[32,384], index: 5, kind: input, shape index: {}]
  %s6 = inlined_call_operand.vmem [shape: f32[1,384], index: 6, kind: input, shape index: {}]
  %s7 = inlined_call_operand.vmem [shape: bf16[16,384], index: 7, kind: output, shape index: {}]
  %s8 = sld [smem:[#allocation0]]
  $region46: #{_heads_call.1} parent=0
    _
  %s10 = ssub.s32 1, %s8
  %s11 = scalar_select 0, %s10, %s8
  $region1: #{_heads_call.1} parent=0
    #allocation3 [shape = 'u8[24576]{0}', space=vmem, size = 0x6000, scoped, tag = 'input window, operand 5, single buffered']
    #allocation4 [shape = 's32[1]{0}', space=sflag, size = 0x4, scoped, tag = 'scoped memory for _heads_call.1']
    %12 = vsyncpa [#allocation4], 0
    // Predicated region
    $region2: #{_heads_call.1} parent=1 // pred_check
      _
    $region3: #{_heads_call.1} parent=1 // pred_check_branch
      %14 = sbr.rel (0) target = $region5
    $region4: #{_heads_call.1} parent=1 // pred_region
      _
    $region5: #{_heads_call.1} parent=1 // pred_fallthru
      _
    // Predicated region
    $region6: #{_heads_call.1} parent=1 // pred_check
      _
    $region7: #{_heads_call.1} parent=1 // pred_check_branch
      %16 = sbr.rel (0) target = $region9
    $region8: #{_heads_call.1} parent=1 // pred_region
      _
    $region9: #{_heads_call.1} parent=1 // pred_fallthru
      _
    // Predicated region
    $region10: #{_heads_call.1} parent=1 // pred_check
      _
    $region11: #{_heads_call.1} parent=1 // pred_check_branch
      %18 = sbr.rel (0) target = $region13
    $region12: #{_heads_call.1} parent=1 // pred_region
      _
    $region13: #{_heads_call.1} parent=1 // pred_fallthru
      _
    // Predicated region
    $region14: #{_heads_call.1} parent=1 // pred_check
      _
    $region15: #{_heads_call.1} parent=1 // pred_check_branch
      %20 = sbr.rel (0) target = $region17
    $region16: #{_heads_call.1} parent=1 // pred_region
      _
    $region17: #{_heads_call.1} parent=1 // pred_fallthru
      _
    // Predicated region
    $region18: #{_heads_call.1} parent=1 // pred_check
      _
    $region19: #{_heads_call.1} parent=1 // pred_check_branch
      %22 = sbr.rel (0) target = $region21
    $region20: #{_heads_call.1} parent=1 // pred_region
      _
    $region21: #{_heads_call.1} parent=1 // pred_fallthru
      _
    // Predicated region
    $region22: #{_heads_call.1} parent=1 // pred_check
      _
    $region23: #{_heads_call.1} parent=1 // pred_check_branch
      %24 = sbr.rel (0) target = $region25
    $region24: #{_heads_call.1} parent=1 // pred_region
      %s26 = ssub.s32 768, 768
      %27 = vsyncadd [#allocation4], %s26
      %s28 = sshll.u32 [#allocation3], 4
      %s29 = int_to_ptr.vmem [resolvable:$true] %s28
      %34 = dma.hbm_to_vmem [thread:$0]  %s5, 768, %s29, [#allocation4], 192, 192, 12
    $region25: #{_heads_call.1} parent=1 // pred_fallthru
      _
    // Predicated region
    $region26: #{_heads_call.1} parent=1 // pred_check
      _
    $region27: #{_heads_call.1} parent=1 // pred_check_branch
      %36 = sbr.rel (0) target = $region29
    $region28: #{_heads_call.1} parent=1 // pred_region
      _
    $region29: #{_heads_call.1} parent=1 // pred_fallthru
      _
    // Predicated region
    $region30: #{_heads_call.1} parent=1 // pred_check
      _
    $region31: #{_heads_call.1} parent=1 // pred_check_branch
      %38 = sbr.rel (0) target = $region33
    $region32: #{_heads_call.1} parent=1 // pred_region
      %39 = dma.done [#allocation4], 768
    $region33: #{_heads_call.1} parent=1 // pred_fallthru
      _
    %p41 = scmp.eq.s32.totalorder 0, 0
    // Predicated region
    $region34: #{_heads_call.1} parent=1 // pred_check
      %p42 = pneg %p41
    $region35: #{_heads_call.1} parent=1 // pred_check_branch
      %44 = sbr.rel (%p42) target = $region37
    $region36: #{_heads_call.1} parent=1 // pred_region
      %v45 = vld [vmem:[%s0] sm:$0xf]
      %v46 = vld [vmem:[%s0 + $0x4] sm:$0xf]
      %v47 = vld [vmem:[%s1] sm:$0xf]
      %v48 = vld [vmem:[%s1 + $0x4] sm:$0xf]
      %v49 = vld [vmem:[%s1 + $0x8] sm:$0xf]
      %v50 = vld [vmem:[%s1 + $0xc] sm:$0xf]
      %v51 = vld [vmem:[%s2] sm:$0x1]
      %v53 = vlaneseq
      %v54 = vshrl.u32 %v53, 7
      %v55 = vsub.s32 0, %v54
      %v56 = vrot.slane %v51, %v55
      %v60 = vunpack.c.l.b16 %v45
      %v61 = vunpack.c.l.b16 %v46
      %v62 = vpack.c.b16 %v61, %v60
      %v67 = vunpack.c.l.b16 %v47
      %v68 = vunpack.c.l.b16 %v48
      %v69 = vunpack.c.l.b16 %v49
      %v70 = vunpack.c.l.b16 %v50
      %v71 = vpack.c.b16 %v68, %v67
      %v72 = vpack.c.b16 %v70, %v69
      %vm75 = vcmask 261120
      %v77 = vsel %vm75, %v62, 0
      %79 = vmatprep.subr.bf16.mxu0 0
      %80 = vmatpush1.bf16.msra.mxu0 0
      %81 = vmatprep.subr.bf16.mxu0 0
      %82 = vmatpush1.bf16.msra.mxu0 0
      %83 = vmatprep.subr.bf16.mxu0 0
      %84 = vmatpush1.bf16.msra.mxu0 0
      %85 = vmatprep.subr.bf16.mxu0 0
      %86 = vmatpush1.bf16.msra.mxu0 0
      %87 = vmatprep.subr.bf16.mxu0 0
      %88 = vmatpush1.bf16.msra.mxu0 0
      %89 = vmatprep.subr.bf16.mxu0 0
      %90 = vmatpush1.bf16.msra.mxu0 0
      %91 = vmatprep.subr.bf16.mxu0 0
      %92 = vmatpush1.bf16.msra.mxu0 %v72
      %93 = vmatprep.subr.bf16.mxu0 0
      %94 = vmatpush1.bf16.msra.mxu0 %v71
      %95 = vmatprep.subr.bf16.mxu0 0
      %96 = vmatpush2.bf16.msra.mxu0 0
      %97 = vmatprep.subr.bf16.mxu0 0
      %98 = vmatpush2.bf16.msra.mxu0 0
      %99 = vmatprep.subr.bf16.mxu0 0
      %100 = vmatpush2.bf16.msra.mxu0 0
      %101 = vmatprep.subr.bf16.mxu0 0
      %102 = vmatpush2.bf16.msra.mxu0 0
      %103 = vmatprep.subr.bf16.mxu0 0
      %104 = vmatpush2.bf16.msra.mxu0 0
      %105 = vmatprep.subr.bf16.mxu0 0
      %106 = vmatpush2.bf16.msra.mxu0 0
      %107 = vmatprep.subr.bf16.mxu0 0
      %108 = vmatpush2.bf16.msra.mxu0 0
      %109 = vmatprep.subr.bf16.mxu0 0
      %110 = vmatpush2.bf16.msra.mxu0 0
      %111 = vmatprep.mubr.bf16.mxu0 0
      %112 = vmatmul.mubr.bf16.gmra.mxu0 %v77
      %v113 = vpop.f32.mrf.mxu0
      %v114 = vadd.f32 %v56, %v113
      %v115 = vpop.f32.mrf.mxu0
      %v116 = vpop.f32.mrf.mxu0
      %v117 = vadd.f32 %v56, %v116
      %v118 = vpop.f32.mrf.mxu0
      %119 = vdwg.mxu0
      %v120 = vmul.f32 %v114, 0.5
      %v121 = vmul.f32 %v117, 0.5
      %v122 = vmul.f32 %v114, 0.044715
      %v123 = vmul.f32 %v117, 0.044715
      %v124 = vmul.f32 %v122, %v114
      %v125 = vmul.f32 %v123, %v117
      %v126 = vmul.f32 %v124, %v114
      %v127 = vmul.f32 %v125, %v117
      %v128 = vadd.f32 %v114, %v126
      %v129 = vadd.f32 %v117, %v127
      %v130 = vmul.f32 %v128, 0.7978846
      %v131 = vmul.f32 %v129, 0.7978846
      %v132 = vtanh.pop %v130
      %v133 = vtanh.pop %v131
      %v134 = vadd.f32 %v132, 1.0
      %v135 = vadd.f32 %v133, 1.0
      %v136 = vmul.f32 %v120, %v134
      %v137 = vmul.f32 %v121, %v135
      %v138 = vsel %vm75, %v136, 0.0
      %139 = vadd.xlane.f32.xlu0 %v138
      %v140 = vpop.xlane.xlu0 %139
      %v141 = vsel %vm75, %v137, 0.0
      %142 = vadd.xlane.f32.xlu0 %v141
      %v143 = vpop.xlane.xlu0 %142
      %v144 = vrcp.pop 32.0
      %v145 = vmul.f32 %v140, %v144
      %v146 = vmul.f32 %v143, %v144
      %v147 = vsub.f32 %v136, %v145
      %v148 = vsub.f32 %v137, %v146
      %v149 = vmul.f32 %v147, %v147
      %v150 = vmul.f32 %v148, %v148
      %v151 = vsel %vm75, %v149, 0.0
      %152 = vadd.xlane.f32.xlu0 %v151
      %v153 = vpop.xlane.xlu0 %152
      %v154 = vsel %vm75, %v150, 0.0
      %155 = vadd.xlane.f32.xlu0 %v154
      %v156 = vpop.xlane.xlu0 %155
      %v157 = vmul.f32 %v153, %v144
      %v158 = vmul.f32 %v156, %v144
      %v159 = vadd.f32 %v157, 1e-12
      %v160 = vadd.f32 %v158, 1e-12
      %v161 = vrsqrt.pop %v159
      %v162 = vrsqrt.pop %v160
      %v163 = vmul.f32 %v147, %v161
      %v164 = vmul.f32 %v148, %v162
      %v165 = vld [vmem:[%s3] sm:$0x1]
      %v167 = vlaneseq
      %v168 = vshrl.u32 %v167, 7
      %v169 = vsub.s32 0, %v168
      %v170 = vrot.slane %v165, %v169
      %v172 = vmul.f32 %v163, %v170
      %v173 = vmul.f32 %v164, %v170
      %v174 = vld [vmem:[%s4] sm:$0x1]
      %v176 = vlaneseq
      %v177 = vshrl.u32 %v176, 7
      %v178 = vsub.s32 0, %v177
      %v179 = vrot.slane %v174, %v178
      %v181 = vadd.f32 %v172, %v179
      %v182 = vadd.f32 %v173, %v179
      %v183 = vpack.c.bf16 %v182, %v181
      %v185 = vunpack.c.l.b16 %v183
      %v186 = vunpack.c.h.b16 %v183
      %v187 = vpack.c.b16 %v185, %v185
      %v188 = vpack.c.b16 %v186, %v186
      %vm191 = vcmask 257024
      %192 = vst.msk [vmem:[#allocation2] sm:$0xf] %vm191, %v187
      %193 = vst.msk [vmem:[#allocation2 + $0x4] sm:$0xf] %vm191, %v188
    $region37: #{_heads_call.1} parent=1 // pred_fallthru
      _
    %v194 = vld [vmem:[#allocation2] sm:$0xf]
    %v195 = vld [vmem:[#allocation2 + $0x4] sm:$0xf]
    %v196 = vld [vmem:[#allocation3] sm:$0xff]
    %v197 = vld [vmem:[#allocation3 + $0x8] sm:$0xf]
    %v198 = vld [vmem:[#allocation3 + $0xc] sm:$0xff]
    %v199 = vld [vmem:[#allocation3 + $0x14] sm:$0xf]
    %v200 = vld [vmem:[#allocation3 + $0x18] sm:$0xff]
    %v201 = vld [vmem:[#allocation3 + $0x20] sm:$0xf]
    %v202 = vld [vmem:[#allocation3 + $0x24] sm:$0xff]
    %v203 = vld [vmem:[#allocation3 + $0x2c] sm:$0xf]
    %v204 = vld [vmem:[%s6] sm:$0x7]
    %v206 = vlaneseq
    %v207 = vshrl.u32 %v206, 7
    %v208 = vsub.s32 0, %v207
    %v209 = vrot.slane %v204, %v208
    %v210 = vlaneseq
    %v211 = vshrl.u32 %v210, 7
    %v212 = vsub.s32 1, %v211
    %v213 = vrot.slane %v204, %v212
    %v214 = vlaneseq
    %v215 = vshrl.u32 %v214, 7
    %v216 = vsub.s32 2, %v215
    %v217 = vrot.slane %v204, %v216
    %v223 = vunpack.c.l.b16 %v194
    %v224 = vunpack.c.l.b16 %v195
    %v225 = vpack.c.b16 %v224, %v223
    %v234 = vunpack.c.l.b16 %v196
    %v235 = vunpack.c.h.b16 %v196
    %v236 = vunpack.c.l.b16 %v197
    %v237 = vunpack.c.l.b16 %v198
    %v238 = vunpack.c.h.b16 %v198
    %v239 = vunpack.c.l.b16 %v199
    %v240 = vunpack.c.l.b16 %v200
    %v241 = vunpack.c.h.b16 %v200
    %v242 = vunpack.c.l.b16 %v201
    %v243 = vunpack.c.l.b16 %v202
    %v244 = vunpack.c.h.b16 %v202
    %v245 = vunpack.c.l.b16 %v203
    %v246 = vpack.c.b16 %v237, %v234
    %v247 = vpack.c.b16 %v238, %v235
    %v248 = vpack.c.b16 %v239, %v236
    %v249 = vpack.c.b16 %v243, %v240
    %v250 = vpack.c.b16 %v244, %v241
    %v251 = vpack.c.b16 %v245, %v242
    %vm258 = vcmask 261120
    %v260 = vsel %vm258, %v225, 0
    %262 = vmatprep.subr.bf16.mxu0 0
    %263 = vmatpush1.bf16.msra.mxu0 0
    %264 = vmatprep.subr.bf16.mxu0 0
    %265 = vmatpush1.bf16.msra.mxu0 0
    %266 = vmatprep.subr.bf16.mxu0 0
    %267 = vmatpush1.bf16.msra.mxu0 0
    %268 = vmatprep.subr.bf16.mxu0 0
    %269 = vmatpush1.bf16.msra.mxu0 0
    %270 = vmatprep.subr.bf16.mxu0 0
    %271 = vmatpush1.bf16.msra.mxu0 0
    %272 = vmatprep.subr.bf16.mxu0 0
    %273 = vmatpush1.bf16.msra.mxu0 0
    %274 = vmatprep.subr.bf16.mxu0 %v250
    %275 = vmatpush1.bf16.msra.mxu0 %v249
    %276 = vmatprep.subr.bf16.mxu0 %v247
    %277 = vmatpush1.bf16.msra.mxu0 %v246
    %278 = vmatprep.subr.bf16.mxu0 0
    %279 = vmatpush2.bf16.msra.mxu0 0
    %280 = vmatprep.subr.bf16.mxu0 0
    %281 = vmatpush2.bf16.msra.mxu0 0
    %282 = vmatprep.subr.bf16.mxu0 0
    %283 = vmatpush2.bf16.msra.mxu0 0
    %284 = vmatprep.subr.bf16.mxu0 0
    %285 = vmatpush2.bf16.msra.mxu0 0
    %286 = vmatprep.subr.bf16.mxu0 0
    %287 = vmatpush2.bf16.msra.mxu0 0
    %288 = vmatprep.subr.bf16.mxu0 0
    %289 = vmatpush2.bf16.msra.mxu0 0
    %290 = vmatprep.subr.bf16.mxu0 0
    %291 = vmatpush2.bf16.msra.mxu0 0
    %292 = vmatprep.subr.bf16.mxu0 0
    %293 = vmatpush2.bf16.msra.mxu0 0
    %294 = vmatprep.mubr.bf16.mxu0 0
    %295 = vmatmul.mubr.bf16.gmra.mxu0 %v260
    %v296 = vpop.f32.mrf.mxu0
    %v297 = vadd.f32 %v209, %v296
    %v298 = vpop.f32.mrf.mxu0
    %v299 = vadd.f32 %v213, %v298
    %v300 = vpop.f32.mrf.mxu0
    %v301 = vadd.f32 %v209, %v300
    %v302 = vpop.f32.mrf.mxu0
    %v303 = vadd.f32 %v213, %v302
    %304 = vdwg.mxu0
    %305 = vmatprep.subr.bf16.mxu0 0
    %306 = vmatpush1.bf16.msra.mxu0 0
    %307 = vmatprep.subr.bf16.mxu0 0
    %308 = vmatpush1.bf16.msra.mxu0 0
    %309 = vmatprep.subr.bf16.mxu0 0
    %310 = vmatpush1.bf16.msra.mxu0 0
    %311 = vmatprep.subr.bf16.mxu0 0
    %312 = vmatpush1.bf16.msra.mxu0 0
    %313 = vmatprep.subr.bf16.mxu0 0
    %314 = vmatpush1.bf16.msra.mxu0 0
    %315 = vmatprep.subr.bf16.mxu0 0
    %316 = vmatpush1.bf16.msra.mxu0 0
    %317 = vmatprep.subr.bf16.mxu0 0
    %318 = vmatpush1.bf16.msra.mxu0 %v251
    %319 = vmatprep.subr.bf16.mxu0 0
    %320 = vmatpush1.bf16.msra.mxu0 %v248
    %321 = vmatprep.subr.bf16.mxu0 0
    %322 = vmatpush2.bf16.msra.mxu0 0
    %323 = vmatprep.subr.bf16.mxu0 0
    %324 = vmatpush2.bf16.msra.mxu0 0
    %325 = vmatprep.subr.bf16.mxu0 0
    %326 = vmatpush2.bf16.msra.mxu0 0
    %327 = vmatprep.subr.bf16.mxu0 0
    %328 = vmatpush2.bf16.msra.mxu0 0
    %329 = vmatprep.subr.bf16.mxu0 0
    %330 = vmatpush2.bf16.msra.mxu0 0
    %331 = vmatprep.subr.bf16.mxu0 0
    %332 = vmatpush2.bf16.msra.mxu0 0
    %333 = vmatprep.subr.bf16.mxu0 0
    %334 = vmatpush2.bf16.msra.mxu0 0
    %335 = vmatprep.subr.bf16.mxu0 0
    %336 = vmatpush2.bf16.msra.mxu0 0
    %337 = vmatprep.mubr.bf16.mxu0 0
    %338 = vmatmul.mubr.bf16.gmra.mxu0 %v260
    %v339 = vpop.f32.mrf.mxu0
    %v340 = vadd.f32 %v217, %v339
    %v341 = vpop.f32.mrf.mxu0
    %v342 = vpop.f32.mrf.mxu0
    %v343 = vadd.f32 %v217, %v342
    %v344 = vpop.f32.mrf.mxu0
    %345 = vdwg.mxu0
    %v346 = vpack.c.bf16 %v301, %v297
    %v347 = vpack.c.bf16 %v303, %v299
    %v348 = vpack.c.bf16 %v343, %v340
    %v352 = vunpack.c.l.b16 %v346
    %v353 = vunpack.c.l.b16 %v347
    %v354 = vunpack.c.l.b16 %v348
    %v355 = vunpack.c.h.b16 %v346
    %v356 = vunpack.c.h.b16 %v347
    %v357 = vunpack.c.h.b16 %v348
    %v358 = vpack.c.b16 %v353, %v352
    %v359 = vpack.c.b16 %v354, %v354
    %v360 = vpack.c.b16 %v356, %v355
    %v361 = vpack.c.b16 %v357, %v357
    %366 = vst [vmem:[%s7] sm:$0xff] %v358
    %367 = vst [vmem:[%s7 + $0x8] sm:$0xf] %v359
    %368 = vst [vmem:[%s7 + $0xc] sm:$0xff] %v360
    %369 = vst [vmem:[%s7 + $0x14] sm:$0xf] %v361
    // Predicated region
    $region38: #{_heads_call.1} parent=1 // pred_check
      _
    $region39: #{_heads_call.1} parent=1 // pred_check_branch
      %371 = sbr.rel (0) target = $region41
    $region40: #{_heads_call.1} parent=1 // pred_region
      _
    $region41: #{_heads_call.1} parent=1 // pred_fallthru
      _
    // Predicated region
    $region42: #{_heads_call.1} parent=1 // pred_check
      _
    $region43: #{_heads_call.1} parent=1 // pred_check_branch
      %373 = sbr.rel (0) target = $region45
    $region44: #{_heads_call.1} parent=1 // pred_region
      _
    $region45: #{_heads_call.1} parent=1 // pred_fallthru
      _
    %374 = vsyncpa [#allocation4], 1

</llo_original>
